<compile_context>
chip_gen: v7x
topology: tpu7x:2x2x1
jax: 0.10.0
libtpu: 0.0.40
codegen_flags: <defaults>
</compile_context>

<pallas_src>
import functools

import jax
import jax.numpy as jnp
from jax.experimental import pallas as pl
from jax.experimental.pallas import tpu as pltpu

_LANE = 128
_SUBLANE = 8


def _round_up(x, m):
    return ((x + m - 1) // m) * m


def _cdiv(a, b):
    return -(-a // b)


def _fused_decoder_kernel(*refs, n_hidden):
    """refs = (x_ref, w0, b0, w1, b1, ..., w_final, b_final, o_ref)."""
    x_ref = refs[0]
    o_ref = refs[-1]
    wb = refs[1:-1]

    x = x_ref[...]                                   # f32 (TB, d_in)
    # Hidden layers: y = x @ W + b (bf16 MXU, f32 acc); leaky_relu slope 0.01.
    for li in range(n_hidden):
        w = wb[2 * li][...]                          # bf16 (in_pad, out_pad)
        b = wb[2 * li + 1][...]                      # f32  (1, out_pad) -> broadcasts
        y = jnp.dot(x.astype(jnp.bfloat16), w,
                    preferred_element_type=jnp.float32) + b
        x = jnp.maximum(y, 0.01 * y)                 # leaky_relu, one VALU op

    # Final layer + softplus (beta=1, threshold=20), matching torch.nn.functional.
    w_f = wb[2 * n_hidden][...]
    b_f = wb[2 * n_hidden + 1][...]
    y = jnp.dot(x.astype(jnp.bfloat16), w_f,
                preferred_element_type=jnp.float32) + b_f
    y = jnp.where(y > 20.0, y, jnp.log1p(jnp.exp(jnp.minimum(y, 20.0))))
    o_ref[...] = y.astype(o_ref.dtype)


def prepare_decoder_params(params, final_params):
    """One-time packing: pad feature dims to 128 lanes, cast weights to bf16.

    The FIRST layer keeps its true input dim (so x needs no feature padding);
    all subsequent input dims match the previous layer's padded output dim.
    Zero padding is exact: padded columns stay 0 through bias-add + leaky_relu
    and padded K rows contribute nothing to the next matmul.
    """
    all_params = list(params) + [final_params]
    flat_wb = []
    in_pad = all_params[0][0].shape[0]               # true latent dim, unpadded
    d_in = in_pad
    for (w, b) in all_params:
        ip, op = w.shape
        op_pad = _round_up(op, _LANE)
        w_p = (jnp.zeros((in_pad, op_pad), jnp.float32)
               .at[:ip, :op].set(w).astype(jnp.bfloat16))
        b_p = jnp.zeros((1, op_pad), jnp.float32).at[0, :op].set(b)
        flat_wb += [w_p, b_p]
        in_pad = op_pad
    n_out = all_params[-1][0].shape[1]
    return flat_wb, len(params), d_in, n_out


def decoder_forward(x, prepared, *, batch_tile=512):
    """Fused decoder forward. x:(B, latent_dim) f32; prepared from prepare_decoder_params."""
    flat_wb, n_hidden, d_in, n_out = prepared
    B, d = x.shape
    assert d == d_in, f"expected latent dim {d_in}, got {d}"
    out_pad = flat_wb[-1].shape[1]                   # final bias (1, out_pad)

    # --- Batch tiling: minimize over-padding, >=2 tiles for v7x dual-TC. ---
    B8 = _round_up(B, _SUBLANE)
    n_tiles = max(_cdiv(B8, batch_tile), 2 if B8 > _SUBLANE else 1)
    TB = _round_up(_cdiv(B8, n_tiles), _SUBLANE)
    B_pad = TB * n_tiles

    x = x.astype(jnp.float32)
    if B_pad != B:
        x_in = jnp.zeros((B_pad, d_in), jnp.float32).at[:B].set(x)
    else:
        x_in = x

    # x tiled over the batch grid (feature dim unpadded = full array dim);
    # every weight/bias is a full resident block (constant index_map).
    in_specs = [pl.BlockSpec((TB, d_in), lambda i: (i, 0))]
    for arr in flat_wb:
        in_specs.append(pl.BlockSpec(arr.shape, lambda i: (0, 0)))

    kernel = functools.partial(_fused_decoder_kernel, n_hidden=n_hidden)
    out_padded = pl.pallas_call(
        kernel,
        out_shape=jax.ShapeDtypeStruct((B_pad, out_pad), jnp.float32),
        grid=(n_tiles,),
        in_specs=in_specs,
        out_specs=pl.BlockSpec((TB, out_pad), lambda i: (i, 0)),
        compiler_params=pltpu.CompilerParams(
            dimension_semantics=("parallel",)),      # shards batch tiles across v7x's 2 TCs
    )(x_in, *flat_wb)

    # Padded rows/cols (softplus of bias / softplus(0)=ln2) sliced off here.
    return out_padded[:B, :n_out]


def init_decoder_params(key, encoder_config, n_input, latent_dim):
    """Deterministic synthetic parameters matching the PyTorch module's shapes."""
    decoder_config = encoder_config[::-1]
    params = []
    input_size = latent_dim
    for neurons in decoder_config:
        key, k1, k2 = jax.random.split(key, 3)
        w = jax.random.normal(k1, (input_size, neurons), jnp.float32) * 0.1
        b = jax.random.normal(k2, (neurons,), jnp.float32) * 0.1
        params.append((w, b))
        input_size = neurons
    key, k1, k2 = jax.random.split(key, 3)
    w_final = jax.random.normal(k1, (decoder_config[-1], n_input), jnp.float32) * 0.1
    b_final = jax.random.normal(k2, (n_input,), jnp.float32) * 0.1
    return params, (w_final, b_final)


def decoder_forward_ref_bf16(x, params, final_params):
    """Pure-JAX reference mirroring the kernel's bf16-operand / f32-acc matmuls."""
    for w, b in params:
        y = jnp.dot(x.astype(jnp.bfloat16), w.astype(jnp.bfloat16),
                    preferred_element_type=jnp.float32) + b
        x = jnp.maximum(y, 0.01 * y)
    w_f, b_f = final_params
    y = jnp.dot(x.astype(jnp.bfloat16), w_f.astype(jnp.bfloat16),
                preferred_element_type=jnp.float32) + b_f
    return jnp.where(y > 20.0, y, jnp.log1p(jnp.exp(jnp.minimum(y, 20.0))))


def decoder_forward_ref_f32(x, params, final_params):
    """Full-f32 reference (module semantics) for a loose sanity check."""
    for w, b in params:
        y = x @ w + b
        x = jnp.where(y > 0, y, 0.01 * y)
    w_f, b_f = final_params
    y = x @ w_f + b_f
    return jnp.where(y > 20.0, y, jnp.log1p(jnp.exp(jnp.minimum(y, 20.0))))


if __name__ == "__main__":
    # Small shapes consistent with the module's forward:
    #   encoder_config = [32, 16]  ->  decoder_config = [16, 32]
    #   latent_dim = 8, n_input = 24, batch = 2
    encoder_config = [32, 16]
    latent_dim = 8
    n_input = 24

    key = jax.random.PRNGKey(0)
    key, kx = jax.random.split(key)
    params, final_params = init_decoder_params(key, encoder_config, n_input, latent_dim)

    # One-time weight packing (outside the per-call path).
    prepared = prepare_decoder_params(params, final_params)

    ok = True
    for batch in (2, 20):          # 20 exercises batch padding + a multi-tile grid
        x = jax.random.normal(kx, (batch, latent_dim), jnp.float32)
        out = jax.block_until_ready(decoder_forward(x, prepared))
        assert out.shape == (batch, n_input)

        ref_bf16 = decoder_forward_ref_bf16(x, params, final_params)
        ref_f32 = decoder_forward_ref_f32(x, params, final_params)
        ok &= bool(jnp.allclose(out, ref_bf16, atol=1e-3, rtol=1e-3))
        ok &= bool(jnp.allclose(out, ref_f32, atol=5e-2, rtol=5e-2))

    assert ok, "mismatch vs reference"
    print("KERNEL_OK")
</pallas_src>

<mosaic_0001>
module attributes {stable_mosaic.version = 11 : i64} {
  func.func @_fused_decoder_kernel(%arg0: i32, %arg1: memref<8x8xf32, #tpu.memory_space<vmem>>, %arg2: memref<8x128xbf16, #tpu.memory_space<vmem>>, %arg3: memref<1x128xf32, #tpu.memory_space<vmem>>, %arg4: memref<128x128xbf16, #tpu.memory_space<vmem>>, %arg5: memref<1x128xf32, #tpu.memory_space<vmem>>, %arg6: memref<128x128xbf16, #tpu.memory_space<vmem>>, %arg7: memref<1x128xf32, #tpu.memory_space<vmem>>, %arg8: memref<8x128xf32, #tpu.memory_space<vmem>>) attributes {dimension_semantics = [#tpu.dimension_semantics<parallel>], iteration_bounds = array<i64: 1>, scalar_prefetch = 0 : i64, scratch_operands = 0 : i64, tpu.core_type = #tpu.core_type<tc>, window_params = [{transform_indices = @transform_0, window_bounds = array<i64: 8, 8>}, {pipeline_mode = #tpu.pipeline_mode<synchronous>, transform_indices = @transform_1, window_bounds = array<i64: 8, 128>}, {pipeline_mode = #tpu.pipeline_mode<synchronous>, transform_indices = @transform_2, window_bounds = array<i64: 1, 128>}, {pipeline_mode = #tpu.pipeline_mode<synchronous>, transform_indices = @transform_3, window_bounds = array<i64: 128, 128>}, {pipeline_mode = #tpu.pipeline_mode<synchronous>, transform_indices = @transform_4, window_bounds = array<i64: 1, 128>}, {pipeline_mode = #tpu.pipeline_mode<synchronous>, transform_indices = @transform_5, window_bounds = array<i64: 128, 128>}, {pipeline_mode = #tpu.pipeline_mode<synchronous>, transform_indices = @transform_6, window_bounds = array<i64: 1, 128>}, {transform_indices = @transform_7, window_bounds = array<i64: 8, 128>}]} {
    %c0 = arith.constant 0 : index
    %c0_0 = arith.constant 0 : index
    %0 = vector.load %arg1[%c0, %c0_0] : memref<8x8xf32, #tpu.memory_space<vmem>>, vector<8x8xf32>
    %c0_1 = arith.constant 0 : index
    %c0_2 = arith.constant 0 : index
    %1 = vector.load %arg2[%c0_1, %c0_2] : memref<8x128xbf16, #tpu.memory_space<vmem>>, vector<8x128xbf16>
    %c0_3 = arith.constant 0 : index
    %c0_4 = arith.constant 0 : index
    %2 = vector.load %arg3[%c0_3, %c0_4] : memref<1x128xf32, #tpu.memory_space<vmem>>, vector<1x128xf32>
    %3 = arith.truncf %0 : vector<8x8xf32> to vector<8x8xbf16>
    %cst = arith.constant dense<0.000000e+00> : vector<8x128xf32>
    %4 = tpu.matmul %3, %1, %cst {dimension_numbers = #tpu.dot_dimension_numbers<[1], [0], [0], [1], [0, 0, 1, 1], [], []>} : vector<8x8xbf16>, vector<8x128xbf16>, vector<8x128xf32> -> vector<8x128xf32>
    %5 = vector.broadcast %2 : vector<1x128xf32> to vector<8x128xf32>
    %6 = arith.addf %4, %5 : vector<8x128xf32>
    %cst_5 = arith.constant 0.00999999977 : f32
    %7 = vector.broadcast %cst_5 : f32 to vector<8x128xf32>
    %8 = arith.mulf %7, %6 : vector<8x128xf32>
    %9 = arith.maximumf %6, %8 : vector<8x128xf32>
    %c0_6 = arith.constant 0 : index
    %c0_7 = arith.constant 0 : index
    %10 = vector.load %arg4[%c0_6, %c0_7] : memref<128x128xbf16, #tpu.memory_space<vmem>>, vector<128x128xbf16>
    %c0_8 = arith.constant 0 : index
    %c0_9 = arith.constant 0 : index
    %11 = vector.load %arg5[%c0_8, %c0_9] : memref<1x128xf32, #tpu.memory_space<vmem>>, vector<1x128xf32>
    %12 = arith.truncf %9 : vector<8x128xf32> to vector<8x128xbf16>
    %cst_10 = arith.constant dense<0.000000e+00> : vector<8x128xf32>
    %13 = tpu.matmul %12, %10, %cst_10 {dimension_numbers = #tpu.dot_dimension_numbers<[1], [0], [0], [1], [0, 0, 1, 1], [], []>} : vector<8x128xbf16>, vector<128x128xbf16>, vector<8x128xf32> -> vector<8x128xf32>
    %14 = vector.broadcast %11 : vector<1x128xf32> to vector<8x128xf32>
    %15 = arith.addf %13, %14 : vector<8x128xf32>
    %cst_11 = arith.constant 0.00999999977 : f32
    %16 = vector.broadcast %cst_11 : f32 to vector<8x128xf32>
    %17 = arith.mulf %16, %15 : vector<8x128xf32>
    %18 = arith.maximumf %15, %17 : vector<8x128xf32>
    %c0_12 = arith.constant 0 : index
    %c0_13 = arith.constant 0 : index
    %19 = vector.load %arg6[%c0_12, %c0_13] : memref<128x128xbf16, #tpu.memory_space<vmem>>, vector<128x128xbf16>
    %c0_14 = arith.constant 0 : index
    %c0_15 = arith.constant 0 : index
    %20 = vector.load %arg7[%c0_14, %c0_15] : memref<1x128xf32, #tpu.memory_space<vmem>>, vector<1x128xf32>
    %21 = arith.truncf %18 : vector<8x128xf32> to vector<8x128xbf16>
    %cst_16 = arith.constant dense<0.000000e+00> : vector<8x128xf32>
    %22 = tpu.matmul %21, %19, %cst_16 {dimension_numbers = #tpu.dot_dimension_numbers<[1], [0], [0], [1], [0, 0, 1, 1], [], []>} : vector<8x128xbf16>, vector<128x128xbf16>, vector<8x128xf32> -> vector<8x128xf32>
    %23 = vector.broadcast %20 : vector<1x128xf32> to vector<8x128xf32>
    %24 = arith.addf %22, %23 : vector<8x128xf32>
    %cst_17 = arith.constant 2.000000e+01 : f32
    %25 = vector.broadcast %cst_17 : f32 to vector<8x128xf32>
    %26 = arith.cmpf ogt, %24, %25 : vector<8x128xf32>
    %cst_18 = arith.constant 2.000000e+01 : f32
    %27 = vector.broadcast %cst_18 : f32 to vector<8x128xf32>
    %28 = arith.minimumf %24, %27 : vector<8x128xf32>
    %29 = math.exp %28 : vector<8x128xf32>
    %30 = math.log1p %29 : vector<8x128xf32>
    %31 = arith.select %26, %24, %30 : vector<8x128xi1>, vector<8x128xf32>
    %c0_19 = arith.constant 0 : index
    %c0_20 = arith.constant 0 : index
    %32 = vector.load %arg8[%c0_19, %c0_20] : memref<8x128xf32, #tpu.memory_space<vmem>>, vector<8x128xf32>
    tpu.vector_store %arg8[%c0_19, %c0_20], %31 {strides = array<i32>} : memref<8x128xf32, #tpu.memory_space<vmem>>, vector<8x128xf32>,
    return
  }
  func.func @transform_0(%arg0: i32) -> (i32, i32) {
    %c0_i32 = arith.constant 0 : i32
    %c0_i32_0 = arith.constant 0 : i32
    return %arg0, %c0_i32 : i32, i32
  }
  func.func @transform_1(%arg0: i32) -> (i32, i32) {
    %c0_i32 = arith.constant 0 : i32
    %c0_i32_0 = arith.constant 0 : i32
    %c0_i32_1 = arith.constant 0 : i32
    return %c0_i32, %c0_i32_0 : i32, i32
  }
  func.func @transform_2(%arg0: i32) -> (i32, i32) {
    %c0_i32 = arith.constant 0 : i32
    %c0_i32_0 = arith.constant 0 : i32
    %c0_i32_1 = arith.constant 0 : i32
    return %c0_i32, %c0_i32_0 : i32, i32
  }
  func.func @transform_3(%arg0: i32) -> (i32, i32) {
    %c0_i32 = arith.constant 0 : i32
    %c0_i32_0 = arith.constant 0 : i32
    %c0_i32_1 = arith.constant 0 : i32
    return %c0_i32, %c0_i32_0 : i32, i32
  }
  func.func @transform_4(%arg0: i32) -> (i32, i32) {
    %c0_i32 = arith.constant 0 : i32
    %c0_i32_0 = arith.constant 0 : i32
    %c0_i32_1 = arith.constant 0 : i32
    return %c0_i32, %c0_i32_0 : i32, i32
  }
  func.func @transform_5(%arg0: i32) -> (i32, i32) {
    %c0_i32 = arith.constant 0 : i32
    %c0_i32_0 = arith.constant 0 : i32
    %c0_i32_1 = arith.constant 0 : i32
    return %c0_i32, %c0_i32_0 : i32, i32
  }
  func.func @transform_6(%arg0: i32) -> (i32, i32) {
    %c0_i32 = arith.constant 0 : i32
    %c0_i32_0 = arith.constant 0 : i32
    %c0_i32_1 = arith.constant 0 : i32
    return %c0_i32, %c0_i32_0 : i32, i32
  }
  func.func @transform_7(%arg0: i32) -> (i32, i32) {
    %c0_i32 = arith.constant 0 : i32
    %c0_i32_0 = arith.constant 0 : i32
    return %arg0, %c0_i32 : i32, i32
  }
}

</mosaic_0001>

<llo_original>
// kernel: tpu_custom_call.1
$region0: #{tpu_custom_call.1}
  #allocation0 [shape = 'u32[]', space=smem, size = 0x4, offset = 0x4, fixed_abs, tag = 'smem constant byte address 0x4 - core index']
  #allocation1 [shape = 'u32[144,128]{1,0:T(1,128)}', space=vmem, size = 0x12000, scoped, tag = 'internal scratch']
  %s0 = inlined_call_operand.hbm [shape: f32[8,8], index: 0, kind: input, shape index: {}]
  %s1 = inlined_call_operand.hbm [shape: bf16[8,128], index: 1, kind: input, shape index: {}]
  %s2 = inlined_call_operand.vmem [shape: f32[1,128], index: 2, kind: input, shape index: {}]
  %s3 = inlined_call_operand.hbm [shape: bf16[128,128], index: 3, kind: input, shape index: {}]
  %s4 = inlined_call_operand.vmem [shape: f32[1,128], index: 4, kind: input, shape index: {}]
  %s5 = inlined_call_operand.hbm [shape: bf16[128,128], index: 5, kind: input, shape index: {}]
  %s6 = inlined_call_operand.vmem [shape: f32[1,128], index: 6, kind: input, shape index: {}]
  %s7 = inlined_call_operand.hbm [shape: f32[8,128], index: 7, kind: output, shape index: {}]
  %s8 = sld [smem:[#allocation0]]
  $region54: #{tpu_custom_call.1} parent=0
    _
  %s10 = ssub.s32 1, %s8
  %s11 = scalar_select 0, %s10, %s8
  $region1: #{tpu_custom_call.1} parent=0
    #allocation2 [shape = 'u8[4096]{0}', space=vmem, size = 0x1000, scoped, tag = 'input window, operand 0, single buffered']
    #allocation3 [shape = 's32[1]{0}', space=sflag, size = 0x4, scoped, tag = 'scoped memory for tpu_custom_call.1']
    #allocation4 [shape = 's32[1]{0}', space=sflag, size = 0x4, scoped, tag = 'scoped memory for tpu_custom_call.1']
    #allocation5 [shape = 'u8[2048]{0}', space=vmem, size = 0x800, scoped, tag = 'input window, operand 1, single buffered']
    #allocation6 [shape = 's32[1]{0}', space=sflag, size = 0x4, scoped, tag = 'scoped memory for tpu_custom_call.1']
    #allocation7 [shape = 'u8[32768]{0}', space=vmem, size = 0x8000, scoped, tag = 'input window, operand 3, single buffered']
    #allocation8 [shape = 'u8[32768]{0}', space=vmem, size = 0x8000, scoped, tag = 'input window, operand 5, single buffered']
    #allocation9 [shape = 's32[1]{0}', space=sflag, size = 0x4, scoped, tag = 'scoped memory for tpu_custom_call.1']
    #allocation10 [shape = 'u8[4096]{0}', space=vmem, size = 0x1000, scoped, tag = 'output window, operand 0, single buffered']
    %12 = vsyncpa [#allocation3], 0
    %13 = vsyncpa [#allocation6], 0
    %14 = vsyncpa [#allocation9], 0
    %15 = vsyncpa [#allocation4], 0
    // Predicated region
    $region2: #{tpu_custom_call.1} parent=1 // pred_check
      _
    $region3: #{tpu_custom_call.1} parent=1 // pred_check_branch
      %17 = sbr.rel (0) target = $region5
    $region4: #{tpu_custom_call.1} parent=1 // pred_region
      %s19 = ssub.s32 128, 128
      %20 = vsyncadd [#allocation3], %s19
      %s22 = sshll.u32 [#allocation2], 4
      %s23 = int_to_ptr.vmem [resolvable:$true] %s22
      %25 = dma.hbm_to_vmem [thread:$0]  %s0, 128, %s23, [#allocation3]
    $region5: #{tpu_custom_call.1} parent=1 // pred_fallthru
      _
    // Predicated region
    $region6: #{tpu_custom_call.1} parent=1 // pred_check
      _
    $region7: #{tpu_custom_call.1} parent=1 // pred_check_branch
      %27 = sbr.rel (0) target = $region9
    $region8: #{tpu_custom_call.1} parent=1 // pred_region
      %s29 = ssub.s32 64, 64
      %30 = vsyncadd [#allocation6], %s29
      %s32 = sshll.u32 [#allocation5], 4
      %s33 = int_to_ptr.vmem [resolvable:$true] %s32
      %35 = dma.hbm_to_vmem [thread:$0]  %s1, 64, %s33, [#allocation6]
    $region9: #{tpu_custom_call.1} parent=1 // pred_fallthru
      _
    // Predicated region
    $region10: #{tpu_custom_call.1} parent=1 // pred_check
      _
    $region11: #{tpu_custom_call.1} parent=1 // pred_check_branch
      %37 = sbr.rel (0) target = $region13
    $region12: #{tpu_custom_call.1} parent=1 // pred_region
      _
    $region13: #{tpu_custom_call.1} parent=1 // pred_fallthru
      _
    // Predicated region
    $region14: #{tpu_custom_call.1} parent=1 // pred_check
      _
    $region15: #{tpu_custom_call.1} parent=1 // pred_check_branch
      %39 = sbr.rel (0) target = $region17
    $region16: #{tpu_custom_call.1} parent=1 // pred_region
      %s41 = ssub.s32 1024, 1024
      %42 = vsyncadd [#allocation6], %s41
      %s43 = sshll.u32 [#allocation7], 4
      %s44 = int_to_ptr.vmem [resolvable:$true] %s43
      %49 = dma.hbm_to_vmem [thread:$0]  %s3, 1024, %s44, [#allocation6], 64, 64, 4
    $region17: #{tpu_custom_call.1} parent=1 // pred_fallthru
      _
    // Predicated region
    $region18: #{tpu_custom_call.1} parent=1 // pred_check
      _
    $region19: #{tpu_custom_call.1} parent=1 // pred_check_branch
      %51 = sbr.rel (0) target = $region21
    $region20: #{tpu_custom_call.1} parent=1 // pred_region
      _
    $region21: #{tpu_custom_call.1} parent=1 // pred_fallthru
      _
    // Predicated region
    $region22: #{tpu_custom_call.1} parent=1 // pred_check
      _
    $region23: #{tpu_custom_call.1} parent=1 // pred_check_branch
      %53 = sbr.rel (0) target = $region25
    $region24: #{tpu_custom_call.1} parent=1 // pred_region
      %s55 = ssub.s32 1024, 1024
      %56 = vsyncadd [#allocation9], %s55
      %s57 = sshll.u32 [#allocation8], 4
      %s58 = int_to_ptr.vmem [resolvable:$true] %s57
      %63 = dma.hbm_to_vmem [thread:$0]  %s5, 1024, %s58, [#allocation9], 64, 64, 4
    $region25: #{tpu_custom_call.1} parent=1 // pred_fallthru
      _
    // Predicated region
    $region26: #{tpu_custom_call.1} parent=1 // pred_check
      _
    $region27: #{tpu_custom_call.1} parent=1 // pred_check_branch
      %65 = sbr.rel (0) target = $region29
    $region28: #{tpu_custom_call.1} parent=1 // pred_region
      _
    $region29: #{tpu_custom_call.1} parent=1 // pred_fallthru
      _
    // Predicated region
    $region30: #{tpu_custom_call.1} parent=1 // pred_check
      _
    $region31: #{tpu_custom_call.1} parent=1 // pred_check_branch
      %67 = sbr.rel (0) target = $region33
    $region32: #{tpu_custom_call.1} parent=1 // pred_region
      %68 = dma.done [#allocation3], 128
    $region33: #{tpu_custom_call.1} parent=1 // pred_fallthru
      _
    // Predicated region
    $region34: #{tpu_custom_call.1} parent=1 // pred_check
      _
    $region35: #{tpu_custom_call.1} parent=1 // pred_check_branch
      %70 = sbr.rel (0) target = $region37
    $region36: #{tpu_custom_call.1} parent=1 // pred_region
      %71 = dma.done [#allocation6], 64
    $region37: #{tpu_custom_call.1} parent=1 // pred_fallthru
      _
    // Predicated region
    $region38: #{tpu_custom_call.1} parent=1 // pred_check
      _
    $region39: #{tpu_custom_call.1} parent=1 // pred_check_branch
      %73 = sbr.rel (0) target = $region41
    $region40: #{tpu_custom_call.1} parent=1 // pred_region
      %74 = dma.done [#allocation6], 1024
    $region41: #{tpu_custom_call.1} parent=1 // pred_fallthru
      _
    // Predicated region
    $region42: #{tpu_custom_call.1} parent=1 // pred_check
      _
    $region43: #{tpu_custom_call.1} parent=1 // pred_check_branch
      %76 = sbr.rel (0) target = $region45
    $region44: #{tpu_custom_call.1} parent=1 // pred_region
      %77 = dma.done [#allocation9], 1024
    $region45: #{tpu_custom_call.1} parent=1 // pred_fallthru
      _
    %v79 = vld [vmem:[#allocation2] sm:$0xff]
    %v80 = vld [vmem:[#allocation5] sm:$0xf]
    %v81 = vld [vmem:[%s2] sm:$0x1]
    %v82 = vpack.c.bf16 %v79, %v79
    %v84 = vlaneseq
    %v85 = vshrl.u32 %v84, 7
    %v86 = vsub.s32 0, %v85
    %v87 = vrot.slane %v81, %v86
    %vm89 = vcmask 64512
    %v91 = vsel %vm89, %v82, 0
    %vm93 = vcmask 1043456
    %v95 = vsel %vm93, %v80, 0
    %97 = vmatprep.subr.bf16.mxu0 0
    %98 = vmatpush1.bf16.msra.mxu0 %v95
    %99 = vmatprep.subr.bf16.mxu0 0
    %100 = vmatpush1.bf16.msra.mxu0 0
    %101 = vmatprep.subr.bf16.mxu0 0
    %102 = vmatpush1.bf16.msra.mxu0 0
    %103 = vmatprep.subr.bf16.mxu0 0
    %104 = vmatpush1.bf16.msra.mxu0 0
    %105 = vmatprep.subr.bf16.mxu0 0
    %106 = vmatpush1.bf16.msra.mxu0 0
    %107 = vmatprep.subr.bf16.mxu0 0
    %108 = vmatpush1.bf16.msra.mxu0 0
    %109 = vmatprep.subr.bf16.mxu0 0
    %110 = vmatpush1.bf16.msra.mxu0 0
    %111 = vmatprep.subr.bf16.mxu0 0
    %112 = vmatpush1.bf16.msra.mxu0 0
    %113 = vmatprep.subr.bf16.mxu0 0
    %114 = vmatpush1.bf16.msra.mxu0 0
    %115 = vmatprep.subr.bf16.mxu0 0
    %116 = vmatpush1.bf16.msra.mxu0 0
    %117 = vmatprep.subr.bf16.mxu0 0
    %118 = vmatpush1.bf16.msra.mxu0 0
    %119 = vmatprep.subr.bf16.mxu0 0
    %120 = vmatpush1.bf16.msra.mxu0 0
    %121 = vmatprep.subr.bf16.mxu0 0
    %122 = vmatpush1.bf16.msra.mxu0 0
    %123 = vmatprep.subr.bf16.mxu0 0
    %124 = vmatpush1.bf16.msra.mxu0 0
    %125 = vmatprep.subr.bf16.mxu0 0
    %126 = vmatpush1.bf16.msra.mxu0 0
    %127 = vmatprep.subr.bf16.mxu0 0
    %128 = vmatpush1.bf16.msra.mxu0 0
    %129 = vmatprep.mubr.bf16.mxu0 0
    %130 = vmatmul.mubr.bf16.gmra.mrb[0].mxu0 %v91
    %v131 = vpop.f32.mrb[0].mxu0
    %v132 = vadd.f32 %v87, %v131
    %v133 = vpop.f32.mrb[0].mxu0
    %v134 = vpop.f32.mrb[0].mxu0
    %v135 = vpop.f32.mrb[0].mxu0
    %136 = vdwg.mxu0
    %v137 = vmul.f32 %v132, 0.01
    %v138 = vmax.f32 %v132, %v137
    %v139 = vld [vmem:[#allocation7] sm:$0xf]
    %v140 = vld [vmem:[#allocation7 + $0x4] sm:$0xf]
    %v141 = vld [vmem:[#allocation7 + $0x8] sm:$0xf]
    %v142 = vld [vmem:[#allocation7 + $0xc] sm:$0xf]
    %v143 = vld [vmem:[#allocation7 + $0x10] sm:$0xf]
    %v144 = vld [vmem:[#allocation7 + $0x14] sm:$0xf]
    %v145 = vld [vmem:[#allocation7 + $0x18] sm:$0xf]
    %v146 = vld [vmem:[#allocation7 + $0x1c] sm:$0xf]
    %v147 = vld [vmem:[#allocation7 + $0x20] sm:$0xf]
    %v148 = vld [vmem:[#allocation7 + $0x24] sm:$0xf]
    %v149 = vld [vmem:[#allocation7 + $0x28] sm:$0xf]
    %v150 = vld [vmem:[#allocation7 + $0x2c] sm:$0xf]
    %v151 = vld [vmem:[#allocation7 + $0x30] sm:$0xf]
    %v152 = vld [vmem:[#allocation7 + $0x34] sm:$0xf]
    %v153 = vld [vmem:[#allocation7 + $0x38] sm:$0xf]
    %v154 = vld [vmem:[#allocation7 + $0x3c] sm:$0xf]
    %v155 = vld [vmem:[%s4] sm:$0x1]
    %v156 = vpack.c.bf16 %v138, %v138
    %v158 = vlaneseq
    %v159 = vshrl.u32 %v158, 7
    %v160 = vsub.s32 0, %v159
    %v161 = vrot.slane %v155, %v160
    %v179 = vunpack.c.l.b16 %v139
    %v180 = vunpack.c.l.b16 %v140
    %v181 = vunpack.c.l.b16 %v141
    %v182 = vunpack.c.l.b16 %v142
    %v183 = vunpack.c.l.b16 %v143
    %v184 = vunpack.c.l.b16 %v144
    %v185 = vunpack.c.l.b16 %v145
    %v186 = vunpack.c.l.b16 %v146
    %v187 = vunpack.c.l.b16 %v147
    %v188 = vunpack.c.l.b16 %v148
    %v189 = vunpack.c.l.b16 %v149
    %v190 = vunpack.c.l.b16 %v150
    %v191 = vunpack.c.l.b16 %v151
    %v192 = vunpack.c.l.b16 %v152
    %v193 = vunpack.c.l.b16 %v153
    %v194 = vunpack.c.l.b16 %v154
    %v195 = vpack.c.b16 %v180, %v179
    %v196 = vpack.c.b16 %v182, %v181
    %v197 = vpack.c.b16 %v184, %v183
    %v198 = vpack.c.b16 %v186, %v185
    %v199 = vpack.c.b16 %v188, %v187
    %v200 = vpack.c.b16 %v190, %v189
    %v201 = vpack.c.b16 %v192, %v191
    %v202 = vpack.c.b16 %v194, %v193
    %211 = vmatprep.subr.bf16.mxu0 0
    %212 = vmatpush1.bf16.msra.mxu0 %v195
    %213 = vmatprep.subr.bf16.mxu0 0
    %214 = vmatpush1.bf16.msra.mxu0 %v196
    %215 = vmatprep.subr.bf16.mxu0 0
    %216 = vmatpush1.bf16.msra.mxu0 %v197
    %217 = vmatprep.subr.bf16.mxu0 0
    %218 = vmatpush1.bf16.msra.mxu0 %v198
    %219 = vmatprep.subr.bf16.mxu0 0
    %220 = vmatpush1.bf16.msra.mxu0 %v199
    %221 = vmatprep.subr.bf16.mxu0 0
    %222 = vmatpush1.bf16.msra.mxu0 %v200
    %223 = vmatprep.subr.bf16.mxu0 0
    %224 = vmatpush1.bf16.msra.mxu0 %v201
    %225 = vmatprep.subr.bf16.mxu0 0
    %226 = vmatpush1.bf16.msra.mxu0 %v202
    %227 = vmatprep.subr.bf16.mxu0 0
    %228 = vmatpush1.bf16.msra.mxu0 0
    %229 = vmatprep.subr.bf16.mxu0 0
    %230 = vmatpush1.bf16.msra.mxu0 0
    %231 = vmatprep.subr.bf16.mxu0 0
    %232 = vmatpush1.bf16.msra.mxu0 0
    %233 = vmatprep.subr.bf16.mxu0 0
    %234 = vmatpush1.bf16.msra.mxu0 0
    %235 = vmatprep.subr.bf16.mxu0 0
    %236 = vmatpush1.bf16.msra.mxu0 0
    %237 = vmatprep.subr.bf16.mxu0 0
    %238 = vmatpush1.bf16.msra.mxu0 0
    %239 = vmatprep.subr.bf16.mxu0 0
    %240 = vmatpush1.bf16.msra.mxu0 0
    %241 = vmatprep.subr.bf16.mxu0 0
    %242 = vmatpush1.bf16.msra.mxu0 0
    %243 = vmatprep.mubr.bf16.mxu0 0
    %244 = vmatmul.mubr.bf16.gmra.mrb[0].mxu0 %v156
    %v245 = vpop.f32.mrb[0].mxu0
    %v246 = vadd.f32 %v161, %v245
    %v247 = vpop.f32.mrb[0].mxu0
    %v248 = vpop.f32.mrb[0].mxu0
    %v249 = vpop.f32.mrb[0].mxu0
    %250 = vdwg.mxu0
    %v251 = vmul.f32 %v246, 0.01
    %v252 = vmax.f32 %v246, %v251
    %v253 = vld [vmem:[#allocation8] sm:$0xf]
    %v254 = vld [vmem:[#allocation8 + $0x4] sm:$0xf]
    %v255 = vld [vmem:[#allocation8 + $0x8] sm:$0xf]
    %v256 = vld [vmem:[#allocation8 + $0xc] sm:$0xf]
    %v257 = vld [vmem:[#allocation8 + $0x10] sm:$0xf]
    %v258 = vld [vmem:[#allocation8 + $0x14] sm:$0xf]
    %v259 = vld [vmem:[#allocation8 + $0x18] sm:$0xf]
    %v260 = vld [vmem:[#allocation8 + $0x1c] sm:$0xf]
    %v261 = vld [vmem:[#allocation8 + $0x20] sm:$0xf]
    %v262 = vld [vmem:[#allocation8 + $0x24] sm:$0xf]
    %v263 = vld [vmem:[#allocation8 + $0x28] sm:$0xf]
    %v264 = vld [vmem:[#allocation8 + $0x2c] sm:$0xf]
    %v265 = vld [vmem:[#allocation8 + $0x30] sm:$0xf]
    %v266 = vld [vmem:[#allocation8 + $0x34] sm:$0xf]
    %v267 = vld [vmem:[#allocation8 + $0x38] sm:$0xf]
    %v268 = vld [vmem:[#allocation8 + $0x3c] sm:$0xf]
    %v269 = vld [vmem:[%s6] sm:$0x1]
    %v270 = vpack.c.bf16 %v252, %v252
    %v272 = vlaneseq
    %v273 = vshrl.u32 %v272, 7
    %v274 = vsub.s32 0, %v273
    %v275 = vrot.slane %v269, %v274
    %v293 = vunpack.c.l.b16 %v253
    %v294 = vunpack.c.l.b16 %v254
    %v295 = vunpack.c.l.b16 %v255
    %v296 = vunpack.c.l.b16 %v256
    %v297 = vunpack.c.l.b16 %v257
    %v298 = vunpack.c.l.b16 %v258
    %v299 = vunpack.c.l.b16 %v259
    %v300 = vunpack.c.l.b16 %v260
    %v301 = vunpack.c.l.b16 %v261
    %v302 = vunpack.c.l.b16 %v262
    %v303 = vunpack.c.l.b16 %v263
    %v304 = vunpack.c.l.b16 %v264
    %v305 = vunpack.c.l.b16 %v265
    %v306 = vunpack.c.l.b16 %v266
    %v307 = vunpack.c.l.b16 %v267
    %v308 = vunpack.c.l.b16 %v268
    %v309 = vpack.c.b16 %v294, %v293
    %v310 = vpack.c.b16 %v296, %v295
    %v311 = vpack.c.b16 %v298, %v297
    %v312 = vpack.c.b16 %v300, %v299
    %v313 = vpack.c.b16 %v302, %v301
    %v314 = vpack.c.b16 %v304, %v303
    %v315 = vpack.c.b16 %v306, %v305
    %v316 = vpack.c.b16 %v308, %v307
    %325 = vmatprep.subr.bf16.mxu0 0
    %326 = vmatpush1.bf16.msra.mxu0 %v309
    %327 = vmatprep.subr.bf16.mxu0 0
    %328 = vmatpush1.bf16.msra.mxu0 %v310
    %329 = vmatprep.subr.bf16.mxu0 0
    %330 = vmatpush1.bf16.msra.mxu0 %v311
    %331 = vmatprep.subr.bf16.mxu0 0
    %332 = vmatpush1.bf16.msra.mxu0 %v312
    %333 = vmatprep.subr.bf16.mxu0 0
    %334 = vmatpush1.bf16.msra.mxu0 %v313
    %335 = vmatprep.subr.bf16.mxu0 0
    %336 = vmatpush1.bf16.msra.mxu0 %v314
    %337 = vmatprep.subr.bf16.mxu0 0
    %338 = vmatpush1.bf16.msra.mxu0 %v315
    %339 = vmatprep.subr.bf16.mxu0 0
    %340 = vmatpush1.bf16.msra.mxu0 %v316
    %341 = vmatprep.subr.bf16.mxu0 0
    %342 = vmatpush1.bf16.msra.mxu0 0
    %343 = vmatprep.subr.bf16.mxu0 0
    %344 = vmatpush1.bf16.msra.mxu0 0
    %345 = vmatprep.subr.bf16.mxu0 0
    %346 = vmatpush1.bf16.msra.mxu0 0
    %347 = vmatprep.subr.bf16.mxu0 0
    %348 = vmatpush1.bf16.msra.mxu0 0
    %349 = vmatprep.subr.bf16.mxu0 0
    %350 = vmatpush1.bf16.msra.mxu0 0
    %351 = vmatprep.subr.bf16.mxu0 0
    %352 = vmatpush1.bf16.msra.mxu0 0
    %353 = vmatprep.subr.bf16.mxu0 0
    %354 = vmatpush1.bf16.msra.mxu0 0
    %355 = vmatprep.subr.bf16.mxu0 0
    %356 = vmatpush1.bf16.msra.mxu0 0
    %357 = vmatprep.mubr.bf16.mxu0 0
    %358 = vmatmul.mubr.bf16.gmra.mrb[0].mxu0 %v270
    %v359 = vpop.f32.mrb[0].mxu0
    %v360 = vadd.f32 %v275, %v359
    %v361 = vpop.f32.mrb[0].mxu0
    %v362 = vpop.f32.mrb[0].mxu0
    %v363 = vpop.f32.mrb[0].mxu0
    %364 = vdwg.mxu0
    %vm365 = vcmp.gt.f32.partialorder %v360, 20.0
    %v366 = vmin.f32 %v360, 20.0
    %v367 = vmul.f32 %v366, 1.442695
    %v368 = vpow.pop %v367
    %v369 = vadd.f32 %v368, 1.0
    %v370 = vlog2.pop %v369
    %v371 = vmul.f32 %v370, 0.6931472
    %v372 = vmul.f32 -0.5, %v368
    %v373 = vadd.f32 %v372, 1.0
    %v374 = vmul.f32 %v373, %v368
    %v375 = vand.u32 2147483647, %v368
    %vm376 = vcmp.lt.f32.partialorder %v375, 0.0004427343
    %v377 = vsel %vm376, %v374, %v371
    %v378 = vsel %vm365, %v360, %v377
    %379 = vst [vmem:[#allocation10] sm:$0xff] %v378
    // Predicated region
    $region46: #{tpu_custom_call.1} parent=1 // pred_check
      _
    $region47: #{tpu_custom_call.1} parent=1 // pred_check_branch
      %381 = sbr.rel (0) target = $region49
    $region48: #{tpu_custom_call.1} parent=1 // pred_region
      %s383 = ssub.s32 128, 128
      %384 = vsyncadd [#allocation4], %s383
      %s386 = sshll.u32 [#allocation10], 4
      %s387 = int_to_ptr.vmem [resolvable:$true] %s386
      %389 = dma.vmem_to_hbm [thread:$0]  %s387, 128, %s7, [#allocation4]
    $region49: #{tpu_custom_call.1} parent=1 // pred_fallthru
      _
    // Predicated region
    $region50: #{tpu_custom_call.1} parent=1 // pred_check
      _
    $region51: #{tpu_custom_call.1} parent=1 // pred_check_branch
      %391 = sbr.rel (0) target = $region53
    $region52: #{tpu_custom_call.1} parent=1 // pred_region
      %392 = dma.done [#allocation4], 128
    $region53: #{tpu_custom_call.1} parent=1 // pred_fallthru
      _
    %393 = vsyncpa [#allocation3], 1
    %394 = vsyncpa [#allocation6], 1
    %395 = vsyncpa [#allocation9], 1
    %396 = vsyncpa [#allocation4], 1

</llo_original>
